<compile_context>
chip_gen: v7x
topology: tpu7x:2x2x1
jax: 0.10.0
libtpu: 0.0.40
codegen_flags: <defaults>
</compile_context>

<pallas_src>
import functools
import math

import jax
import jax.numpy as jnp
from jax.experimental import pallas as pl
from jax.experimental.pallas import tpu as pltpu

_VMEM_LIMIT = 32 * 1024 * 1024        # safe scoped-VMEM budget on v5e / v6e / v7x
_NORM_BLOCK_BUDGET = 4 * 1024 * 1024  # per-buffer budget for HW-chunked norm blocks


def _round_up(x, m):
    return (x + m - 1) // m * m


def _act(x, act):
    if act == "leaky_relu":
        return jnp.where(x >= 0, x, x * 0.2)
    if act == "relu":
        return jnp.maximum(x, 0)
    return x


# ----------------------------------------------------------------------------
# Batched tiled matmul: (P, M, K) @ (P, K, N) + b, bf16 operands on the MXU,
# f32 VMEM accumulator, fused pre-activation / bias / output activation.
# ----------------------------------------------------------------------------
def _bmm_kernel(x_ref, w_ref, b_ref, o_ref, acc_ref, *, in_act, out_act):
    k = pl.program_id(3)

    @pl.when(k == 0)
    def _():
        acc_ref[...] = jnp.zeros_like(acc_ref)

    x = _act(x_ref[0], in_act)                       # free VPU work under the MXU
    acc_ref[...] += jnp.dot(x, w_ref[0], preferred_element_type=jnp.float32)

    @pl.when(k == pl.num_programs(3) - 1)
    def _():
        y = acc_ref[...] + b_ref[...]                # f32 epilogue
        if out_act == "tanh":
            y = jnp.tanh(y)
        o_ref[0] = y.astype(o_ref.dtype)


def pack_matmul_weights(w_pkn, bias, tn=512, tk=1024):
    """Pre-cast / pre-pad a static (P, K, N) weight matrix once at module init."""
    P, K, N = w_pkn.shape
    tk = min(tk, _round_up(K, 128))
    tn = min(tn, _round_up(N, 128))
    Kp, Np = _round_up(K, tk), _round_up(N, tn)
    w = jnp.pad(w_pkn.astype(jnp.float32),
                ((0, 0), (0, Kp - K), (0, Np - N))).astype(jnp.bfloat16)
    b = jnp.pad(bias.astype(jnp.float32).reshape(1, N), ((0, 0), (0, Np - N)))
    return {"w": w, "b": b, "K": K, "N": N, "tk": tk, "tn": tn}


def batched_matmul_bias_act(x_pmk, packed, in_act="none", out_act="none", tm=256):
    P, M, K = x_pmk.shape
    w, b = packed["w"], packed["b"]
    assert K == packed["K"] and P == w.shape[0]
    Kp, Np = w.shape[1], w.shape[2]
    tk, tn, N = packed["tk"], packed["tn"], packed["N"]
    tm = min(tm, _round_up(M, 8))
    Mp = _round_up(M, tm)
    xb = jnp.pad(x_pmk.astype(jnp.bfloat16), ((0, 0), (0, Mp - M), (0, Kp - K)))

    grid = (P, Mp // tm, Np // tn, Kp // tk)
    out = pl.pallas_call(
        functools.partial(_bmm_kernel, in_act=in_act, out_act=out_act),
        out_shape=jax.ShapeDtypeStruct((P, Mp, Np), jnp.bfloat16),
        grid=grid,
        in_specs=[
            pl.BlockSpec((1, tm, tk), lambda p, i, j, k: (p, i, k)),
            pl.BlockSpec((1, tk, tn), lambda p, i, j, k: (p, k, j)),
            pl.BlockSpec((1, tn), lambda p, i, j, k: (0, j)),
        ],
        out_specs=pl.BlockSpec((1, tm, tn), lambda p, i, j, k: (p, i, j)),
        scratch_shapes=[pltpu.VMEM((tm, tn), jnp.float32)],
        compiler_params=pltpu.CompilerParams(
            dimension_semantics=("parallel", "parallel", "parallel", "arbitrary"),
            vmem_limit_bytes=_VMEM_LIMIT),
        cost_estimate=pl.CostEstimate(
            flops=2 * P * Mp * Np * Kp,
            transcendentals=P * Mp * Np if out_act == "tanh" else 0,
            bytes_accessed=P * (Mp * Kp + Kp * Np + Mp * Np) * 2),
    )(xb, w, b)
    if Mp != M or Np != N:
        out = out[:, :M, :N]
    return out


# ----------------------------------------------------------------------------
# Normalisation: (a) per-(B, C) sum / sumsq stats kernel, (b) normalize kernel
# applying a folded per-channel scale/shift with SiLU / residual / skip-concat
# fused into lane-segment stores.
# ----------------------------------------------------------------------------
def _pick_hw_chunk(hw, row_bytes, budget=_NORM_BLOCK_BUDGET):
    """Largest multiple-of-8 divisor of hw whose block fits the VMEM budget."""
    max_rows = max(8, budget // max(int(row_bytes), 1))
    if hw <= max_rows:
        return hw
    best = hw
    c = 8
    while c <= max_rows:
        if hw % c == 0:
            best = c
        c += 8
    return best if best <= max_rows else hw


def _stats_kernel(y_ref, o_ref):
    @pl.when(pl.program_id(1) == 0)
    def _():
        o_ref[...] = jnp.zeros_like(o_ref)

    y = y_ref[0].astype(jnp.float32)                 # f32 accumulation (bf16 input)
    o_ref[0] += jnp.concatenate(
        [jnp.sum(y, axis=0, keepdims=True),
         jnp.sum(y * y, axis=0, keepdims=True)], axis=0)


def channel_stats(y_nhwc):
    """Per-(batch, channel) sum and sum-of-squares over H*W (f32)."""
    B, H, W, C = y_nhwc.shape
    HW = H * W
    chunk = _pick_hw_chunk(HW, 2 * 2 * C)
    nc = HW // chunk
    stats = pl.pallas_call(
        _stats_kernel,
        out_shape=jax.ShapeDtypeStruct((B, 2, C), jnp.float32),
        grid=(B, nc),
        in_specs=[pl.BlockSpec((1, chunk, C), lambda b, c: (b, c, 0))],
        out_specs=pl.BlockSpec((1, 2, C), lambda b, c: (b, 0, 0)),
        compiler_params=pltpu.CompilerParams(
            dimension_semantics=("parallel", "arbitrary"),
            vmem_limit_bytes=_VMEM_LIMIT),
    )(y_nhwc.reshape(B, HW, C).astype(jnp.bfloat16))
    return stats[:, 0, :], stats[:, 1, :]


def _affine_concat_kernel(*refs, has_skip, cs, skip_act):
    if has_skip:
        y_ref, sc_ref, sh_ref, s_ref, o_ref = refs
    else:
        y_ref, sc_ref, sh_ref, o_ref = refs
    v = (y_ref[0].astype(jnp.float32) * sc_ref[0] + sh_ref[0]).astype(o_ref.dtype)
    if has_skip:
        # two lane-segment stores (no in-register concat)
        o_ref[0, :, 0:cs] = _act(s_ref[0], skip_act)
        o_ref[0, :, cs:] = v
    else:
        o_ref[0] = v


def apply_affine_concat(y_nhwc, scale_bc, shift_bc, skip_nhwc=None,
                        skip_act="leaky_relu"):
    """out = concat([act(skip), y*scale + shift], C)  (or y*scale + shift)."""
    B, H, W, C = y_nhwc.shape
    HW = H * W
    cs = 0 if skip_nhwc is None else skip_nhwc.shape[-1]
    cout = cs + C
    chunk = _pick_hw_chunk(HW, 2 * 2 * (C + cs + cout))
    nc = HW // chunk

    args = [y_nhwc.reshape(B, HW, C).astype(jnp.bfloat16),
            scale_bc.reshape(B, 1, C).astype(jnp.float32),
            shift_bc.reshape(B, 1, C).astype(jnp.float32)]
    in_specs = [pl.BlockSpec((1, chunk, C), lambda b, c: (b, c, 0)),
                pl.BlockSpec((1, 1, C), lambda b, c: (b, 0, 0)),
                pl.BlockSpec((1, 1, C), lambda b, c: (b, 0, 0))]
    if skip_nhwc is not None:
        args.append(skip_nhwc.reshape(B, HW, cs).astype(jnp.bfloat16))
        in_specs.append(pl.BlockSpec((1, chunk, cs), lambda b, c: (b, c, 0)))

    out = pl.pallas_call(
        functools.partial(_affine_concat_kernel, has_skip=skip_nhwc is not None,
                          cs=cs, skip_act=skip_act),
        out_shape=jax.ShapeDtypeStruct((B, HW, cout), jnp.bfloat16),
        grid=(B, nc),
        in_specs=in_specs,
        out_specs=pl.BlockSpec((1, chunk, cout), lambda b, c: (b, c, 0)),
        compiler_params=pltpu.CompilerParams(
            dimension_semantics=("parallel", "parallel"),
            vmem_limit_bytes=_VMEM_LIMIT),
    )(*args)
    return out.reshape(B, H, W, cout)


def instance_norm(y_nhwc, skip_nhwc=None, skip_act="leaky_relu", eps=1e-5):
    """nn.InstanceNorm2d(affine=False); optionally fuses concat([act(skip), IN(y)])."""
    B, H, W, C = y_nhwc.shape
    s1, s2 = channel_stats(y_nhwc)
    hw = float(H * W)
    mean = s1 / hw
    var = jnp.maximum(s2 / hw - mean * mean, 0.0)
    rstd = jax.lax.rsqrt(var + eps)
    return apply_affine_concat(y_nhwc, rstd, -mean * rstd, skip_nhwc, skip_act)


def _gn_silu_res_concat_kernel(y_ref, xd_ref, xs_ref, sc_ref, sh_ref, o_ref,
                               *, cs, skip_act):
    t = y_ref[0].astype(jnp.float32) * sc_ref[0] + sh_ref[0]    # GroupNorm + affine
    v = xd_ref[0].astype(jnp.float32) + t * jax.nn.sigmoid(t)   # residual + SiLU
    o_ref[0, :, 0:cs] = _act(xs_ref[0], skip_act)
    o_ref[0, :, cs:] = v.astype(o_ref.dtype)


def group_norm_silu_res_concat(y_nhwc, xdec_nhwc, xskip_nhwc, gamma, beta,
                               groups, skip_act="leaky_relu", eps=1e-5):
    """Fused ResSkip tail + skip concat:
       concat([act(x_skip), x_dec + SiLU(GN(y)*gamma + beta)], C)."""
    B, H, W, C = y_nhwc.shape
    HW = H * W
    cs = xskip_nhwc.shape[-1]
    cg = C // groups

    s1, s2 = channel_stats(y_nhwc)
    n = float(HW * cg)
    gm = s1.reshape(B, groups, cg).sum(axis=-1) / n
    gs = s2.reshape(B, groups, cg).sum(axis=-1) / n
    var = jnp.maximum(gs - gm * gm, 0.0)
    rstd = jnp.repeat(jax.lax.rsqrt(var + eps), cg, axis=-1)
    mean = jnp.repeat(gm, cg, axis=-1)
    scale = gamma[None, :] * rstd
    shift = beta[None, :] - mean * scale

    chunk = _pick_hw_chunk(HW, 2 * 2 * (2 * C + cs + cs + C))
    nc = HW // chunk
    out = pl.pallas_call(
        functools.partial(_gn_silu_res_concat_kernel, cs=cs, skip_act=skip_act),
        out_shape=jax.ShapeDtypeStruct((B, HW, cs + C), jnp.bfloat16),
        grid=(B, nc),
        in_specs=[
            pl.BlockSpec((1, chunk, C), lambda b, c: (b, c, 0)),
            pl.BlockSpec((1, chunk, C), lambda b, c: (b, c, 0)),
            pl.BlockSpec((1, chunk, cs), lambda b, c: (b, c, 0)),
            pl.BlockSpec((1, 1, C), lambda b, c: (b, 0, 0)),
            pl.BlockSpec((1, 1, C), lambda b, c: (b, 0, 0)),
        ],
        out_specs=pl.BlockSpec((1, chunk, cs + C), lambda b, c: (b, c, 0)),
        compiler_params=pltpu.CompilerParams(
            dimension_semantics=("parallel", "parallel"),
            vmem_limit_bytes=_VMEM_LIMIT),
    )(y_nhwc.reshape(B, HW, C).astype(jnp.bfloat16),
      xdec_nhwc.reshape(B, HW, C).astype(jnp.bfloat16),
      xskip_nhwc.reshape(B, HW, cs).astype(jnp.bfloat16),
      scale.reshape(B, 1, C).astype(jnp.float32),
      shift.reshape(B, 1, C).astype(jnp.float32))
    return out.reshape(B, H, W, cs + C)


# ----------------------------------------------------------------------------
# Conv wrappers: bf16 im2col / polyphase glue in plain JAX, matmuls in Pallas.
# ----------------------------------------------------------------------------
def _im2col(x_nhwc, k, stride, pad):
    B, H, W, C = x_nhwc.shape
    xp = jnp.pad(x_nhwc, ((0, 0), (pad, pad), (pad, pad), (0, 0)))
    Ho = (H + 2 * pad - k) // stride + 1
    Wo = (W + 2 * pad - k) // stride + 1
    cols = [xp[:, i:i + stride * Ho:stride, j:j + stride * Wo:stride, :]
            for i in range(k) for j in range(k)]
    patches = jnp.concatenate(cols, axis=-1)          # (B, Ho, Wo, k*k*C)
    return patches.reshape(B * Ho * Wo, k * k * C), Ho, Wo


def conv2d(x_nhwc, packed, k, stride, pad, in_act="none", out_act="none"):
    """nn.Conv2d; pre-activation is applied in-kernel (exact since act(0)=0)."""
    B = x_nhwc.shape[0]
    patches, Ho, Wo = _im2col(x_nhwc.astype(jnp.bfloat16), k, stride, pad)
    y = batched_matmul_bias_act(patches[None], packed, in_act=in_act, out_act=out_act)
    return y[0].reshape(B, Ho, Wo, packed["N"])


def conv_transpose2d(x_nhwc, packed, in_act="none", out_act="none"):
    """nn.ConvTranspose2d(k=4, s=2, p=1) via polyphase decomposition; the four
    phases run in ONE pallas_call with a leading parallel 'phase' grid axis."""
    B, H, W, Cin = x_nhwc.shape
    Cout = packed["N"]
    xp = jnp.pad(x_nhwc.astype(jnp.bfloat16), ((0, 0), (1, 1), (1, 1), (0, 0)))
    phases = []
    for py in range(2):
        for px in range(2):
            cols = [xp[:, py + r:py + r + H, px + s:px + s + W, :]
                    for r in range(2) for s in range(2)]
            phases.append(jnp.concatenate(cols, axis=-1).reshape(B * H * W, 4 * Cin))
    xP = jnp.stack(phases, axis=0)                    # (4, B*H*W, 4*Cin)
    y = batched_matmul_bias_act(xP, packed, in_act=in_act, out_act=out_act)
    y = y.reshape(2, 2, B, H, W, Cout)
    return jnp.transpose(y, (2, 3, 0, 4, 1, 5)).reshape(B, 2 * H, 2 * W, Cout)


# ----------------------------------------------------------------------------
# UnetSkipConnectionBlock
# ----------------------------------------------------------------------------
class UnetSkipConnectionBlock:
    def __init__(self, outer_nc, inner_nc, input_nc=None, submodule=None,
                 norm_layer=None, layer=0, embedding_dim=128, use_dropout=False,
                 self_attention=False, blur=False, outermost=False,
                 innermost=False, key=None):
        self.outermost = outermost
        self.innermost = innermost
        self.submodule = submodule
        self.embedding_dim = embedding_dim
        if input_nc is None:
            input_nc = outer_nc
        if key is None:
            key = jax.random.PRNGKey(0)
        keys = jax.random.split(key, 6)

        # downconv: Conv2d(input_nc, inner_nc, 4, stride=2, pad=1, bias=True)
        fan_dn = input_nc * 16
        std_dn = math.sqrt(2.0 / fan_dn)                # kaiming_normal_(leaky_relu)
        w_dn = std_dn * jax.random.normal(keys[0], (inner_nc, input_nc, 4, 4), jnp.float32)
        b_dn = jax.random.uniform(keys[1], (inner_nc,), jnp.float32,
                                  -1.0 / math.sqrt(fan_dn), 1.0 / math.sqrt(fan_dn))
        dn_mat = jnp.transpose(w_dn, (2, 3, 1, 0)).reshape(16 * input_nc, inner_nc)
        self.down_mm = pack_matmul_weights(dn_mat[None], b_dn)

        # upconv: ConvTranspose2d(up_in, outer_nc, 4, stride=2, pad=1, bias=True)
        up_in = inner_nc + embedding_dim if innermost else inner_nc * 2
        fan_up = outer_nc * 16
        std_up = math.sqrt(2.0 / fan_up)
        w_up = std_up * jax.random.normal(keys[2], (up_in, outer_nc, 4, 4), jnp.float32)
        b_up = jax.random.uniform(keys[3], (outer_nc,), jnp.float32,
                                  -1.0 / math.sqrt(fan_up), 1.0 / math.sqrt(fan_up))
        mats = []
        for py in range(2):
            for px in range(2):
                wsub = w_up[:, :, 3 - py::-2, :][:, :, :, 3 - px::-2]   # (Cin,Cout,2,2)
                mats.append(jnp.transpose(wsub, (2, 3, 0, 1)).reshape(4 * up_in, outer_nc))
        self.up_mm = pack_matmul_weights(jnp.stack(mats, axis=0), b_up)

        # ResSkip(outer_nc): only for middle blocks
        if not outermost and not innermost:
            fan_rs = outer_nc * 9
            br = 1.0 / math.sqrt(fan_rs)
            w_rs = jax.random.uniform(keys[4], (outer_nc, outer_nc, 3, 3), jnp.float32, -br, br)
            b_rs = jax.random.uniform(keys[5], (outer_nc,), jnp.float32, -br, br)
            rs_mat = jnp.transpose(w_rs, (2, 3, 1, 0)).reshape(9 * outer_nc, outer_nc)
            self.rs_mm = pack_matmul_weights(rs_mat[None], b_rs)
            self.rs_gamma = jnp.ones((outer_nc,), jnp.float32)
            self.rs_beta = jnp.zeros((outer_nc,), jnp.float32)
            self.rs_groups = 8
        else:
            w_rs = b_rs = None
            self.rs_mm = None
            self.rs_gamma = self.rs_beta = None
            self.rs_groups = 8

        # raw f32 parameters kept for the plain-JAX reference check
        self.params = dict(down_w=w_dn, down_b=b_dn, up_w=w_up, up_b=b_up,
                           rs_w=w_rs, rs_b=b_rs,
                           rs_gamma=self.rs_gamma, rs_beta=self.rs_beta)

        # TODO(synk): SelfAttention (self_attention and layer in [4, 6]) and
        # Dropout(0.3) (use_dropout=True) are not instantiated in this config.
        self.self_attn = None

    # public API keeps the torch NCHW contract; recursion stays NHWC / bf16.
    def __call__(self, x_nchw, style=None):
        x = jnp.transpose(x_nchw, (0, 2, 3, 1)).astype(jnp.bfloat16)
        out, enc = self._forward_nhwc(x, style)
        out = jnp.transpose(out, (0, 3, 1, 2)).astype(jnp.float32)
        enc = None if enc is None else enc.astype(jnp.float32)
        return out, enc

    def _process_submodule(self, enc_nhwc, style):
        if self.submodule is None:
            return enc_nhwc, None
        if isinstance(self.submodule, UnetSkipConnectionBlock):
            return self.submodule._forward_nhwc(enc_nhwc, style)
        # TODO(synk): generic (non-Pallas) submodules fall back to the NCHW contract.
        out_nchw, enc = self.submodule(
            jnp.transpose(enc_nhwc, (0, 3, 1, 2)).astype(jnp.float32), style)
        return jnp.transpose(out_nchw, (0, 2, 3, 1)).astype(jnp.bfloat16), enc

    @staticmethod
    def _interpolate_if_needed(dec_nhwc, x_nhwc):
        if dec_nhwc.shape[1:3] != x_nhwc.shape[1:3]:
            # TODO(synk): bilinear resize fallback stays plain JAX (never hit for even H, W).
            B, _, _, C = dec_nhwc.shape
            r = jax.image.resize(dec_nhwc.astype(jnp.float32),
                                 (B, x_nhwc.shape[1], x_nhwc.shape[2], C),
                                 method="bilinear", antialias=False)
            return r.astype(dec_nhwc.dtype)
        return dec_nhwc

    def _forward_nhwc(self, x, style=None):
        B = x.shape[0]

        # down: (inplace LeakyReLU ->) Conv2d(4, s=2, p=1) (-> InstanceNorm)
        enc = conv2d(x, self.down_mm, k=4, stride=2, pad=1,
                     in_act="none" if self.outermost else "leaky_relu")

        if self.innermost:
            if style is not None:
                st = style.reshape(B, 1, 1, -1).astype(enc.dtype)
                enc = jnp.concatenate([st, enc], axis=-1)     # [style, encoded] on C
            # up: ReLU -> ConvT(4, s=2, p=1) -> InstanceNorm (skip-concat fused)
            dec = conv_transpose2d(enc, self.up_mm, in_act="relu")
            if dec.shape[1:3] == x.shape[1:3]:
                out = instance_norm(dec, skip_nhwc=x)         # concat([leaky(x), IN(dec)])
            else:
                dn = self._interpolate_if_needed(instance_norm(dec), x)
                out = jnp.concatenate([_act(x, "leaky_relu"), dn], axis=-1)
            enc_flat = jnp.transpose(enc, (0, 3, 1, 2)).reshape(B, -1)
            return out, enc_flat

        if not self.outermost:                                # middle: downnorm
            enc = instance_norm(enc)

        sub_out, enc_real = self._process_submodule(enc, style)

        if self.outermost:
            # up: ReLU -> ConvT -> Tanh (relu + tanh fused into the matmul kernel)
            dec = conv_transpose2d(sub_out, self.up_mm, in_act="relu", out_act="tanh")
            return self._interpolate_if_needed(dec, x), enc_real

        # middle: ReLU -> ConvT -> InstanceNorm -> ResSkip (+ fused skip concat)
        dec = conv_transpose2d(sub_out, self.up_mm, in_act="relu")
        dec = instance_norm(dec)
        dec = self._interpolate_if_needed(dec, x)
        y = conv2d(dec, self.rs_mm, k=3, stride=1, pad=1)
        out = group_norm_silu_res_concat(y, dec, x, self.rs_gamma, self.rs_beta,
                                         groups=self.rs_groups)
        return out, enc_real


# ----------------------------------------------------------------------------
# Plain-JAX (XLA, f32) reference of the torch forward, for a value-level check.
# ----------------------------------------------------------------------------
def _ref_conv(x, w_oihw, b, stride, pad):
    y = jax.lax.conv_general_dilated(
        x, w_oihw, window_strides=(stride, stride),
        padding=[(pad, pad), (pad, pad)],
        dimension_numbers=("NCHW", "OIHW", "NCHW"),
        precision=jax.lax.Precision.HIGHEST)
    return y + b.reshape(1, -1, 1, 1)


def _ref_conv_transpose(x, w_iohw, b):
    wk = jnp.transpose(jnp.flip(w_iohw, axis=(2, 3)), (1, 0, 2, 3))
    y = jax.lax.conv_general_dilated(
        x, wk, window_strides=(1, 1), padding=[(2, 2), (2, 2)],
        lhs_dilation=(2, 2), dimension_numbers=("NCHW", "OIHW", "NCHW"),
        precision=jax.lax.Precision.HIGHEST)
    return y + b.reshape(1, -1, 1, 1)


def _ref_instance_norm(x, eps=1e-5):
    mean = x.mean(axis=(2, 3), keepdims=True)
    var = x.var(axis=(2, 3), keepdims=True)
    return (x - mean) / jnp.sqrt(var + eps)


def _ref_group_norm(x, groups, gamma, beta, eps=1e-5):
    B, C, H, W = x.shape
    xg = x.reshape(B, groups, C // groups, H, W)
    mean = xg.mean(axis=(2, 3, 4), keepdims=True)
    var = xg.var(axis=(2, 3, 4), keepdims=True)
    xn = ((xg - mean) / jnp.sqrt(var + eps)).reshape(B, C, H, W)
    return xn * gamma.reshape(1, C, 1, 1) + beta.reshape(1, C, 1, 1)


def _ref_forward(block, x, style):
    p = block.params
    if not block.outermost:
        x = jnp.where(x >= 0, x, 0.2 * x)   # nn.LeakyReLU(0.2, inplace=True) on x
    enc = _ref_conv(x, p["down_w"], p["down_b"], 2, 1)
    if block.innermost:
        if style is not None:
            enc = jnp.concatenate([style.reshape(style.shape[0], -1, 1, 1), enc], axis=1)
        dec = _ref_instance_norm(_ref_conv_transpose(jnp.maximum(enc, 0.0),
                                                     p["up_w"], p["up_b"]))
        return jnp.concatenate([x, dec], axis=1), enc.reshape(x.shape[0], -1)
    if not block.outermost:
        enc = _ref_instance_norm(enc)
    if block.submodule is not None:
        sub, enc_real = _ref_forward(block.submodule, enc, style)
    else:
        sub, enc_real = enc, None
    dec = _ref_conv_transpose(jnp.maximum(sub, 0.0), p["up_w"], p["up_b"])
    if block.outermost:
        return jnp.tanh(dec), enc_real
    dec = _ref_instance_norm(dec)
    y = _ref_conv(dec, p["rs_w"], p["rs_b"], 1, 1)
    dec = dec + jax.nn.silu(_ref_group_norm(y, 8, p["rs_gamma"], p["rs_beta"]))
    return jnp.concatenate([x, dec], axis=1), enc_real


# ----------------------------------------------------------------------------
if __name__ == "__main__":
    key = jax.random.PRNGKey(0)
    k_x, k_s, k_in, k_mid, k_out = jax.random.split(key, 5)

    B = 2
    img_nc = 4            # outermost in/out channels
    base_nc = 8           # middle outer_nc (divisible by 8 for GroupNorm(8, .))
    mid_nc = 16
    bottleneck_nc = 32
    emb = 16
    H = W = 8             # 8 -> 4 -> 2 -> 1 at the bottleneck (style concat needs 1x1)

    inner = UnetSkipConnectionBlock(mid_nc, bottleneck_nc, embedding_dim=emb,
                                    innermost=True, key=k_in)
    middle = UnetSkipConnectionBlock(base_nc, mid_nc, submodule=inner,
                                     embedding_dim=emb, key=k_mid)
    net = UnetSkipConnectionBlock(img_nc, base_nc, input_nc=img_nc, submodule=middle,
                                  embedding_dim=emb, outermost=True, key=k_out)

    x = jax.random.normal(k_x, (B, img_nc, H, W), jnp.float32)
    style = jax.random.normal(k_s, (B, emb), jnp.float32)

    out, enc = net(x, style)
    out = jax.block_until_ready(out)
    enc = jax.block_until_ready(enc)

    assert out.shape == (B, img_nc, H, W), out.shape
    assert enc.shape == (B, bottleneck_nc + emb), enc.shape
    assert bool(jnp.all(jnp.isfinite(out))) and bool(jnp.all(jnp.isfinite(enc)))

    # value-level check against a plain-JAX f32 reference of the torch forward
    ref_out, ref_enc = _ref_forward(net, x, style)

    def rel_rmse(a, b):
        a = a.astype(jnp.float32)
        b = b.astype(jnp.float32)
        return float(jnp.sqrt(jnp.mean((a - b) ** 2) / (jnp.mean(b ** 2) + 1e-12)))

    err_out = rel_rmse(out, ref_out)
    err_enc = rel_rmse(enc, ref_enc)
    assert err_out < 0.12 and err_enc < 0.12, (err_out, err_enc)

    print("KERNEL_OK")
</pallas_src>

<mosaic_0001>
module attributes {stable_mosaic.version = 11 : i64} {
  func.func @_bmm_kernel(%arg0: i32, %arg1: i32, %arg2: i32, %arg3: i32, %arg4: memref<1x32x128xbf16, #tpu.memory_space<vmem>>, %arg5: memref<1x128x128xbf16, #tpu.memory_space<vmem>>, %arg6: memref<1x128xf32, #tpu.memory_space<vmem>>, %arg7: memref<1x32x128xbf16, #tpu.memory_space<vmem>>, %arg8: memref<32x128xf32, #tpu.memory_space<vmem>>) attributes {dimension_semantics = [#tpu.dimension_semantics<parallel>, #tpu.dimension_semantics<parallel>, #tpu.dimension_semantics<parallel>, #tpu.dimension_semantics<arbitrary>], iteration_bounds = array<i64: 1, 1, 1, 1>, scalar_prefetch = 0 : i64, scratch_operands = 1 : i64, tpu.core_type = #tpu.core_type<tc>, window_params = [{transform_indices = @transform_0, window_bounds = array<i64: 1, 32, 128>}, {transform_indices = @transform_1, window_bounds = array<i64: 1, 128, 128>}, {transform_indices = @transform_2, window_bounds = array<i64: 1, 128>}, {transform_indices = @transform_3, window_bounds = array<i64: 1, 32, 128>}]} {
    %c0_i32 = arith.constant 0 : i32
    %0 = arith.cmpi eq, %arg3, %c0_i32 : i32
    %1 = arith.extui %0 : i1 to i32
    %c0_i32_0 = arith.constant 0 : i32
    %2 = arith.cmpi ne, %1, %c0_i32_0 : i32
    scf.if %2 {
      %cst_12 = arith.constant 0.000000e+00 : f32
      %14 = vector.broadcast %cst_12 : f32 to vector<32x128xf32>
      %c0_13 = arith.constant 0 : index
      %c0_14 = arith.constant 0 : index
      %15 = vector.load %arg8[%c0_13, %c0_14] : memref<32x128xf32, #tpu.memory_space<vmem>>, vector<32x128xf32>
      tpu.vector_store %arg8[%c0_13, %c0_14], %14 {strides = array<i32>} : memref<32x128xf32, #tpu.memory_space<vmem>>, vector<32x128xf32>,
    } else {
    }
    %c0 = arith.constant 0 : index
    %c0_1 = arith.constant 0 : index
    %c0_2 = arith.constant 0 : index
    %3 = vector.load %arg4[%c0, %c0_1, %c0_2] : memref<1x32x128xbf16, #tpu.memory_space<vmem>>, vector<1x32x128xbf16>
    %4 = vector.shape_cast %3 : vector<1x32x128xbf16> to vector<32x128xbf16>
    %c0_3 = arith.constant 0 : index
    %c0_4 = arith.constant 0 : index
    %5 = vector.load %arg8[%c0_3, %c0_4] : memref<32x128xf32, #tpu.memory_space<vmem>>, vector<32x128xf32>
    %c0_5 = arith.constant 0 : index
    %c0_6 = arith.constant 0 : index
    %c0_7 = arith.constant 0 : index
    %6 = vector.load %arg5[%c0_5, %c0_6, %c0_7] : memref<1x128x128xbf16, #tpu.memory_space<vmem>>, vector<1x128x128xbf16>
    %7 = vector.shape_cast %6 : vector<1x128x128xbf16> to vector<128x128xbf16>
    %cst = arith.constant dense<0.000000e+00> : vector<32x128xf32>
    %8 = tpu.matmul %4, %7, %cst {dimension_numbers = #tpu.dot_dimension_numbers<[1], [0], [0], [1], [0, 0, 1, 1], [], []>} : vector<32x128xbf16>, vector<128x128xbf16>, vector<32x128xf32> -> vector<32x128xf32>
    %9 = arith.addf %5, %8 : vector<32x128xf32>
    %c0_8 = arith.constant 0 : index
    %c0_9 = arith.constant 0 : index
    %10 = vector.load %arg8[%c0_8, %c0_9] : memref<32x128xf32, #tpu.memory_space<vmem>>, vector<32x128xf32>
    tpu.vector_store %arg8[%c0_8, %c0_9], %9 {strides = array<i32>} : memref<32x128xf32, #tpu.memory_space<vmem>>, vector<32x128xf32>,
    %c0_i32_10 = arith.constant 0 : i32
    %11 = arith.cmpi eq, %arg3, %c0_i32_10 : i32
    %12 = arith.extui %11 : i1 to i32
    %c0_i32_11 = arith.constant 0 : i32
    %13 = arith.cmpi ne, %12, %c0_i32_11 : i32
    scf.if %13 {
      %c0_12 = arith.constant 0 : index
      %c0_13 = arith.constant 0 : index
      %14 = vector.load %arg8[%c0_12, %c0_13] : memref<32x128xf32, #tpu.memory_space<vmem>>, vector<32x128xf32>
      %c0_14 = arith.constant 0 : index
      %c0_15 = arith.constant 0 : index
      %15 = vector.load %arg6[%c0_14, %c0_15] : memref<1x128xf32, #tpu.memory_space<vmem>>, vector<1x128xf32>
      %16 = vector.broadcast %15 : vector<1x128xf32> to vector<32x128xf32>
      %17 = arith.addf %14, %16 : vector<32x128xf32>
      %18 = arith.truncf %17 : vector<32x128xf32> to vector<32x128xbf16>
      %c0_16 = arith.constant 0 : index
      %c0_17 = arith.constant 0 : index
      %c0_18 = arith.constant 0 : index
      %19 = vector.load %arg7[%c0_16, %c0_17, %c0_18] : memref<1x32x128xbf16, #tpu.memory_space<vmem>>, vector<1x32x128xbf16>
      %20 = vector.shape_cast %19 : vector<1x32x128xbf16> to vector<32x128xbf16>
      %21 = vector.shape_cast %18 : vector<32x128xbf16> to vector<1x32x128xbf16>
      tpu.vector_store %arg7[%c0_16, %c0_17, %c0_18], %21 {strides = array<i32>} : memref<1x32x128xbf16, #tpu.memory_space<vmem>>, vector<1x32x128xbf16>,
    } else {
    }
    return
  }
  func.func @transform_0(%arg0: i32, %arg1: i32, %arg2: i32, %arg3: i32) -> (i32, i32, i32) {
    %c0_i32 = arith.constant 0 : i32
    return %arg0, %arg1, %arg3 : i32, i32, i32
  }
  func.func @transform_1(%arg0: i32, %arg1: i32, %arg2: i32, %arg3: i32) -> (i32, i32, i32) {
    %c0_i32 = arith.constant 0 : i32
    return %arg0, %arg3, %arg2 : i32, i32, i32
  }
  func.func @transform_2(%arg0: i32, %arg1: i32, %arg2: i32, %arg3: i32) -> (i32, i32) {
    %c0_i32 = arith.constant 0 : i32
    %c0_i32_0 = arith.constant 0 : i32
    return %c0_i32, %arg2 : i32, i32
  }
  func.func @transform_3(%arg0: i32, %arg1: i32, %arg2: i32, %arg3: i32) -> (i32, i32, i32) {
    %c0_i32 = arith.constant 0 : i32
    return %arg0, %arg1, %arg2 : i32, i32, i32
  }
}

</mosaic_0001>

<llo_original>
// kernel: tpu_custom_call.1
$region0: #{tpu_custom_call.1}
  #allocation0 [shape = 'u32[]', space=smem, size = 0x4, offset = 0x4, fixed_abs, tag = 'smem constant byte address 0x4 - core index']
  #allocation1 [shape = 'u32[144,128]{1,0:T(1,128)}', space=vmem, size = 0x12000, scoped, tag = 'internal scratch']
  #allocation2 [shape = 'f32[32,128]{1,0:T(8,128)}', space=vmem, size = 0x4000, scoped, tag = 'scratch operand']
  %s0 = inlined_call_operand.hbm [shape: bf16[1,32,128], index: 0, kind: input, shape index: {}]
  %s1 = inlined_call_operand.hbm [shape: bf16[1,128,128], index: 1, kind: input, shape index: {}]
  %s2 = inlined_call_operand.vmem [shape: f32[1,128], index: 2, kind: input, shape index: {}]
  %s3 = inlined_call_operand.hbm [shape: bf16[1,32,128], index: 3, kind: output, shape index: {}]
  %s4 = sld [smem:[#allocation0]]
  $region38: #{tpu_custom_call.1} parent=0
    _
  %s6 = ssub.s32 1, %s4
  %s7 = scalar_select 0, %s6, %s4
  $region1: #{tpu_custom_call.1} parent=0
    #allocation3 [shape = 'u8[8192]{0}', space=vmem, size = 0x2000, scoped, tag = 'input window, operand 0, single buffered']
    #allocation4 [shape = 's32[1]{0}', space=sflag, size = 0x4, scoped, tag = 'scoped memory for tpu_custom_call.1']
    #allocation5 [shape = 's32[1]{0}', space=sflag, size = 0x4, scoped, tag = 'scoped memory for tpu_custom_call.1']
    #allocation6 [shape = 'u8[32768]{0}', space=vmem, size = 0x8000, scoped, tag = 'input window, operand 1, single buffered']
    #allocation7 [shape = 's32[1]{0}', space=sflag, size = 0x4, scoped, tag = 'scoped memory for tpu_custom_call.1']
    #allocation8 [shape = 'u8[8192]{0}', space=vmem, size = 0x2000, scoped, tag = 'output window, operand 0, single buffered']
    %8 = vsyncpa [#allocation4], 0
    %9 = vsyncpa [#allocation7], 0
    %10 = vsyncpa [#allocation5], 0
    // Predicated region
    $region2: #{tpu_custom_call.1} parent=1 // pred_check
      _
    $region3: #{tpu_custom_call.1} parent=1 // pred_check_branch
      %12 = sbr.rel (0) target = $region5
    $region4: #{tpu_custom_call.1} parent=1 // pred_region
      %s14 = ssub.s32 256, 256
      %15 = vsyncadd [#allocation4], %s14
      %s16 = sshll.u32 [#allocation3], 4
      %s17 = int_to_ptr.vmem [resolvable:$true] %s16
      %22 = dma.hbm_to_vmem [thread:$0]  %s0, 256, %s17, [#allocation4], 64, 64, 4
    $region5: #{tpu_custom_call.1} parent=1 // pred_fallthru
      _
    // Predicated region
    $region6: #{tpu_custom_call.1} parent=1 // pred_check
      _
    $region7: #{tpu_custom_call.1} parent=1 // pred_check_branch
      %24 = sbr.rel (0) target = $region9
    $region8: #{tpu_custom_call.1} parent=1 // pred_region
      %s26 = ssub.s32 1024, 1024
      %27 = vsyncadd [#allocation7], %s26
      %s28 = sshll.u32 [#allocation6], 4
      %s29 = int_to_ptr.vmem [resolvable:$true] %s28
      %34 = dma.hbm_to_vmem [thread:$0]  %s1, 1024, %s29, [#allocation7], 64, 64, 4
    $region9: #{tpu_custom_call.1} parent=1 // pred_fallthru
      _
    // Predicated region
    $region10: #{tpu_custom_call.1} parent=1 // pred_check
      _
    $region11: #{tpu_custom_call.1} parent=1 // pred_check_branch
      %36 = sbr.rel (0) target = $region13
    $region12: #{tpu_custom_call.1} parent=1 // pred_region
      _
    $region13: #{tpu_custom_call.1} parent=1 // pred_fallthru
      _
    // Predicated region
    $region14: #{tpu_custom_call.1} parent=1 // pred_check
      _
    $region15: #{tpu_custom_call.1} parent=1 // pred_check_branch
      %38 = sbr.rel (0) target = $region17
    $region16: #{tpu_custom_call.1} parent=1 // pred_region
      %39 = dma.done [#allocation4], 256
    $region17: #{tpu_custom_call.1} parent=1 // pred_fallthru
      _
    // Predicated region
    $region18: #{tpu_custom_call.1} parent=1 // pred_check
      _
    $region19: #{tpu_custom_call.1} parent=1 // pred_check_branch
      %41 = sbr.rel (0) target = $region21
    $region20: #{tpu_custom_call.1} parent=1 // pred_region
      %42 = dma.done [#allocation7], 1024
    $region21: #{tpu_custom_call.1} parent=1 // pred_fallthru
      _
    %p44 = scmp.eq.s32.totalorder 0, 0
    // Predicated region
    $region22: #{tpu_custom_call.1} parent=1 // pred_check
      %p45 = pneg %p44
    $region23: #{tpu_custom_call.1} parent=1 // pred_check_branch
      %47 = sbr.rel (%p45) target = $region25
    $region24: #{tpu_custom_call.1} parent=1 // pred_region
      %48 = vst [vmem:[#allocation2] sm:$0xff] 0.0
      %49 = vst [vmem:[#allocation2 + $0x8] sm:$0xff] 0.0
      %50 = vst [vmem:[#allocation2 + $0x10] sm:$0xff] 0.0
      %51 = vst [vmem:[#allocation2 + $0x18] sm:$0xff] 0.0
    $region25: #{tpu_custom_call.1} parent=1 // pred_fallthru
      _
    %v52 = vld [vmem:[#allocation3] sm:$0xf]
    %v53 = vld [vmem:[#allocation3 + $0x4] sm:$0xf]
    %v54 = vld [vmem:[#allocation3 + $0x8] sm:$0xf]
    %v55 = vld [vmem:[#allocation3 + $0xc] sm:$0xf]
    %v56 = vld [vmem:[#allocation2] sm:$0xff]
    %v57 = vld [vmem:[#allocation2 + $0x8] sm:$0xff]
    %v58 = vld [vmem:[#allocation2 + $0x10] sm:$0xff]
    %v59 = vld [vmem:[#allocation2 + $0x18] sm:$0xff]
    %v60 = vld [vmem:[#allocation6] sm:$0xf]
    %v61 = vld [vmem:[#allocation6 + $0x4] sm:$0xf]
    %v62 = vld [vmem:[#allocation6 + $0x8] sm:$0xf]
    %v63 = vld [vmem:[#allocation6 + $0xc] sm:$0xf]
    %v64 = vld [vmem:[#allocation6 + $0x10] sm:$0xf]
    %v65 = vld [vmem:[#allocation6 + $0x14] sm:$0xf]
    %v66 = vld [vmem:[#allocation6 + $0x18] sm:$0xf]
    %v67 = vld [vmem:[#allocation6 + $0x1c] sm:$0xf]
    %v68 = vld [vmem:[#allocation6 + $0x20] sm:$0xf]
    %v69 = vld [vmem:[#allocation6 + $0x24] sm:$0xf]
    %v70 = vld [vmem:[#allocation6 + $0x28] sm:$0xf]
    %v71 = vld [vmem:[#allocation6 + $0x2c] sm:$0xf]
    %v72 = vld [vmem:[#allocation6 + $0x30] sm:$0xf]
    %v73 = vld [vmem:[#allocation6 + $0x34] sm:$0xf]
    %v74 = vld [vmem:[#allocation6 + $0x38] sm:$0xf]
    %v75 = vld [vmem:[#allocation6 + $0x3c] sm:$0xf]
    %v80 = vunpack.c.l.b16 %v52
    %v81 = vunpack.c.l.b16 %v53
    %v82 = vunpack.c.l.b16 %v54
    %v83 = vunpack.c.l.b16 %v55
    %v84 = vpack.c.b16 %v81, %v80
    %v85 = vpack.c.b16 %v83, %v82
    %v104 = vunpack.c.l.b16 %v60
    %v105 = vunpack.c.l.b16 %v61
    %v106 = vunpack.c.l.b16 %v62
    %v107 = vunpack.c.l.b16 %v63
    %v108 = vunpack.c.l.b16 %v64
    %v109 = vunpack.c.l.b16 %v65
    %v110 = vunpack.c.l.b16 %v66
    %v111 = vunpack.c.l.b16 %v67
    %v112 = vunpack.c.l.b16 %v68
    %v113 = vunpack.c.l.b16 %v69
    %v114 = vunpack.c.l.b16 %v70
    %v115 = vunpack.c.l.b16 %v71
    %v116 = vunpack.c.l.b16 %v72
    %v117 = vunpack.c.l.b16 %v73
    %v118 = vunpack.c.l.b16 %v74
    %v119 = vunpack.c.l.b16 %v75
    %v120 = vpack.c.b16 %v105, %v104
    %v121 = vpack.c.b16 %v107, %v106
    %v122 = vpack.c.b16 %v109, %v108
    %v123 = vpack.c.b16 %v111, %v110
    %v124 = vpack.c.b16 %v113, %v112
    %v125 = vpack.c.b16 %v115, %v114
    %v126 = vpack.c.b16 %v117, %v116
    %v127 = vpack.c.b16 %v119, %v118
    %136 = vmatprep.subr.bf16.mxu0 0
    %137 = vmatpush1.bf16.msra.mxu0 %v120
    %138 = vmatprep.subr.bf16.mxu0 0
    %139 = vmatpush1.bf16.msra.mxu0 %v121
    %140 = vmatprep.subr.bf16.mxu0 0
    %141 = vmatpush1.bf16.msra.mxu0 %v122
    %142 = vmatprep.subr.bf16.mxu0 0
    %143 = vmatpush1.bf16.msra.mxu0 %v123
    %144 = vmatprep.subr.bf16.mxu0 0
    %145 = vmatpush1.bf16.msra.mxu0 %v124
    %146 = vmatprep.subr.bf16.mxu0 0
    %147 = vmatpush1.bf16.msra.mxu0 %v125
    %148 = vmatprep.subr.bf16.mxu0 0
    %149 = vmatpush1.bf16.msra.mxu0 %v126
    %150 = vmatprep.subr.bf16.mxu0 0
    %151 = vmatpush1.bf16.msra.mxu0 %v127
    %152 = vmatprep.subr.bf16.mxu0 0
    %153 = vmatpush1.bf16.msra.mxu0 0
    %154 = vmatprep.subr.bf16.mxu0 0
    %155 = vmatpush1.bf16.msra.mxu0 0
    %156 = vmatprep.subr.bf16.mxu0 0
    %157 = vmatpush1.bf16.msra.mxu0 0
    %158 = vmatprep.subr.bf16.mxu0 0
    %159 = vmatpush1.bf16.msra.mxu0 0
    %160 = vmatprep.subr.bf16.mxu0 0
    %161 = vmatpush1.bf16.msra.mxu0 0
    %162 = vmatprep.subr.bf16.mxu0 0
    %163 = vmatpush1.bf16.msra.mxu0 0
    %164 = vmatprep.subr.bf16.mxu0 0
    %165 = vmatpush1.bf16.msra.mxu0 0
    %166 = vmatprep.subr.bf16.mxu0 0
    %167 = vmatpush1.bf16.msra.mxu0 0
    %168 = vmatprep.mubr.bf16.mxu0 0
    %169 = vmatmul.mubr.bf16.gmra.mrb[0].mxu0 %v84
    %v170 = vpop.f32.mrb[0].mxu0
    %v171 = vadd.f32 0.0, %v170
    %v172 = vpop.f32.mrb[0].mxu0
    %v173 = vpop.f32.mrb[0].mxu0
    %v174 = vadd.f32 0.0, %v173
    %v175 = vpop.f32.mrb[0].mxu0
    %176 = vmatprep.mubr.bf16.mxu0 0
    %177 = vmatmul.mubr.bf16.gmra.mrb[0].mxu0 %v85
    %v178 = vpop.f32.mrb[0].mxu0
    %v179 = vadd.f32 0.0, %v178
    %v180 = vpop.f32.mrb[0].mxu0
    %v181 = vpop.f32.mrb[0].mxu0
    %v182 = vadd.f32 0.0, %v181
    %v183 = vpop.f32.mrb[0].mxu0
    %184 = vdwg.mxu0
    %v185 = vadd.f32 %v56, %v171
    %v186 = vadd.f32 %v57, %v174
    %v187 = vadd.f32 %v58, %v179
    %v188 = vadd.f32 %v59, %v182
    %189 = vst [vmem:[#allocation2] sm:$0xff] %v185
    %190 = vst [vmem:[#allocation2 + $0x8] sm:$0xff] %v186
    %191 = vst [vmem:[#allocation2 + $0x10] sm:$0xff] %v187
    %192 = vst [vmem:[#allocation2 + $0x18] sm:$0xff] %v188
    // Predicated region
    $region26: #{tpu_custom_call.1} parent=1 // pred_check
      %p193 = pneg %p44
    $region27: #{tpu_custom_call.1} parent=1 // pred_check_branch
      %195 = sbr.rel (%p193) target = $region29
    $region28: #{tpu_custom_call.1} parent=1 // pred_region
      %v196 = vld [vmem:[#allocation2] sm:$0xff]
      %v197 = vld [vmem:[#allocation2 + $0x8] sm:$0xff]
      %v198 = vld [vmem:[#allocation2 + $0x10] sm:$0xff]
      %v199 = vld [vmem:[#allocation2 + $0x18] sm:$0xff]
      %v200 = vld [vmem:[%s2] sm:$0x1]
      %v202 = vlaneseq
      %v203 = vshrl.u32 %v202, 7
      %v204 = vsub.s32 0, %v203
      %v205 = vrot.slane %v200, %v204
      %v207 = vadd.f32 %v196, %v205
      %v208 = vadd.f32 %v197, %v205
      %v209 = vadd.f32 %v198, %v205
      %v210 = vadd.f32 %v199, %v205
      %v211 = vpack.c.bf16 %v208, %v207
      %v212 = vpack.c.bf16 %v210, %v209
      %v215 = vunpack.c.l.b16 %v211
      %v216 = vunpack.c.h.b16 %v211
      %v217 = vunpack.c.l.b16 %v212
      %v218 = vunpack.c.h.b16 %v212
      %v219 = vpack.c.b16 %v215, %v215
      %v220 = vpack.c.b16 %v216, %v216
      %v221 = vpack.c.b16 %v217, %v217
      %v222 = vpack.c.b16 %v218, %v218
      %227 = vst [vmem:[#allocation8] sm:$0xf] %v219
      %228 = vst [vmem:[#allocation8 + $0x4] sm:$0xf] %v220
      %229 = vst [vmem:[#allocation8 + $0x8] sm:$0xf] %v221
      %230 = vst [vmem:[#allocation8 + $0xc] sm:$0xf] %v222
    $region29: #{tpu_custom_call.1} parent=1 // pred_fallthru
      _
    // Predicated region
    $region30: #{tpu_custom_call.1} parent=1 // pred_check
      _
    $region31: #{tpu_custom_call.1} parent=1 // pred_check_branch
      %232 = sbr.rel (0) target = $region33
    $region32: #{tpu_custom_call.1} parent=1 // pred_region
      %s234 = ssub.s32 256, 256
      %235 = vsyncadd [#allocation5], %s234
      %s236 = sshll.u32 [#allocation8], 4
      %s237 = int_to_ptr.vmem [resolvable:$true] %s236
      %242 = dma.vmem_to_hbm [thread:$0]  %s237, 256, %s3, [#allocation5], 64, 64, 4
    $region33: #{tpu_custom_call.1} parent=1 // pred_fallthru
      _
    // Predicated region
    $region34: #{tpu_custom_call.1} parent=1 // pred_check
      _
    $region35: #{tpu_custom_call.1} parent=1 // pred_check_branch
      %244 = sbr.rel (0) target = $region37
    $region36: #{tpu_custom_call.1} parent=1 // pred_region
      %245 = dma.done [#allocation5], 256
    $region37: #{tpu_custom_call.1} parent=1 // pred_fallthru
      _
    %246 = vsyncpa [#allocation4], 1
    %247 = vsyncpa [#allocation7], 1
    %248 = vsyncpa [#allocation5], 1

</llo_original>
